<compile_context>
chip_gen: v7x
topology: tpu7x:2x2x1
jax: 0.10.0
libtpu: 0.0.40
codegen_flags: <defaults>
</compile_context>

<pallas_src>
import functools

import jax
import jax.numpy as jnp
from jax.experimental import pallas as pl
from jax.experimental.pallas import tpu as pltpu


_TARGET_BLOCK_BYTES = 4 * 1024 * 1024   # per-input VMEM block (x2 inputs, double-buffered)
_MAX_LANE_TILE = 32768                  # lane-axis cap
_VMEM_LIMIT_BYTES = 32 * 1024 * 1024    # raise v5e's 16 MiB scoped default


def _round_up(x, m):
    return (x + m - 1) // m * m


def _round_down(x, m):
    return x // m * m


# ----------------------------------------------------------------------------
# Tile selection
# ----------------------------------------------------------------------------
def _pick_rows_tile(R, D, itemsize):
    """dim == last path: blocks of (rows_tile, D), reduction over lanes."""
    row_bytes = max(1, _round_up(D, 128) * itemsize)        # VMEM-padded row
    budget = max(8, _round_down(_TARGET_BLOCK_BYTES // row_bytes, 8))
    if R <= budget:
        if R >= 256:                       # keep >= 2 grid steps for v7x megacore
            return _round_up(pl.cdiv(R, 2), 8)
        return R                           # full extent (no 8-multiple needed)
    return budget


def _pick_sublane_tiles(pre, D, post, itemsize):
    """General path: blocks of (pre_tile, d_tile, post_tile), reduce sublanes."""
    target = _TARGET_BLOCK_BYTES
    d_pad = _round_up(D, 8)

    lane_budget = _round_down(target // max(1, d_pad * itemsize), 128)
    lane_budget = max(128, min(lane_budget, _MAX_LANE_TILE))

    if post > lane_budget:
        post_tile, pre_tile = lane_budget, 1
    else:
        post_tile = post
        post_pad = _round_up(post_tile, 128)
        row_bytes = max(1, d_pad * post_pad * itemsize)      # VMEM-padded pre row
        pre_tile = max(1, min(pre, target // row_bytes))
        # The (pre_tile, 1, post_tile) output/accumulator blocks pad their unit
        # sublane dim to 8 in VMEM; cap pre_tile so they stay ~<= 1 MiB each.
        pre_tile = max(1, min(pre_tile, 32768 // post_pad))

    # Keep >= 2 parallel grid steps when there is enough work (v7x megacore).
    if pl.cdiv(pre, pre_tile) * pl.cdiv(post, post_tile) == 1 and pre * post >= 256:
        if pre >= 2:
            pre_tile = pl.cdiv(pre, 2)
        elif post >= 256:
            post_tile = _round_up(pl.cdiv(post, 2), 128)

    # Split the reduction dim over a trailing "arbitrary" grid axis if a single
    # block would blow the per-input VMEM budget (keeps lane tiles wide and
    # fits v7x's smaller VMEM for very large D).
    post_pad = _round_up(post_tile, 128)
    if d_pad * pre_tile * post_pad * itemsize > target and D > 8:
        d_tile = _round_down(target // max(1, pre_tile * post_pad * itemsize), 8)
        d_tile = min(D, max(8, d_tile))
    else:
        d_tile = D
    return pre_tile, post_tile, d_tile


# ----------------------------------------------------------------------------
# Kernels
# ----------------------------------------------------------------------------
def _cos_sim_lane_kernel(x1_ref, x2_ref, o_ref, *, eps):
    # x1_ref / x2_ref: (rows_tile, D)   o_ref: (rows_tile, 1)
    a = x1_ref[...].astype(jnp.float32)
    b = x2_ref[...].astype(jnp.float32)
    dot = jnp.sum(a * b, axis=-1, keepdims=True)
    s1 = jnp.sum(a * a, axis=-1, keepdims=True)
    s2 = jnp.sum(b * b, axis=-1, keepdims=True)
    denom = jnp.maximum(s1 * s2, eps * eps)
    o_ref[...] = (dot * jax.lax.rsqrt(denom)).astype(o_ref.dtype)


def _cos_sim_sublane_kernel(x1_ref, x2_ref, o_ref, dot_acc, s1_acc, s2_acc, *,
                            eps, d_total, d_tile, mask_d):
    # x1_ref / x2_ref: (pre_tile, d_tile, post_tile)   o_ref: (pre_tile, 1, post_tile)
    k = pl.program_id(2)

    @pl.when(k == 0)
    def _init():
        dot_acc[...] = jnp.zeros_like(dot_acc)
        s1_acc[...] = jnp.zeros_like(s1_acc)
        s2_acc[...] = jnp.zeros_like(s2_acc)

    a = x1_ref[...].astype(jnp.float32)
    b = x2_ref[...].astype(jnp.float32)
    if mask_d:  # ragged last block of the split reduction axis
        row = jax.lax.broadcasted_iota(jnp.int32, a.shape, 1)
        valid = (k * d_tile + row) < d_total
        a = jnp.where(valid, a, 0.0)
        b = jnp.where(valid, b, 0.0)

    # Single pass over the loaded tiles: all three reductions reuse a / b.
    dot_acc[...] += jnp.sum(a * b, axis=1, keepdims=True)
    s1_acc[...] += jnp.sum(a * a, axis=1, keepdims=True)
    s2_acc[...] += jnp.sum(b * b, axis=1, keepdims=True)

    @pl.when(k == pl.num_programs(2) - 1)
    def _finalize():
        denom = jnp.maximum(s1_acc[...] * s2_acc[...], eps * eps)
        o_ref[...] = (dot_acc[...] * jax.lax.rsqrt(denom)).astype(o_ref.dtype)


# ----------------------------------------------------------------------------
# Wrapper
# ----------------------------------------------------------------------------
def cosine_similarity(x1, x2, dim=1, eps=1e-8, *,
                      _rows_tile=None, _pre_tile=None, _post_tile=None,
                      _d_tile=None):
    """Cosine similarity of x1, x2 along `dim` (PyTorch semantics)."""
    shape = jnp.broadcast_shapes(x1.shape, x2.shape)
    out_dtype = jnp.promote_types(x1.dtype, x2.dtype)
    # No-ops for the common equal-shape / equal-dtype case.
    # TODO(synk): stream un-expanded broadcast operands via index_map -> block 0
    # instead of materializing the broadcast copy in HBM.
    x1 = jnp.broadcast_to(x1.astype(out_dtype), shape)
    x2 = jnp.broadcast_to(x2.astype(out_dtype), shape)

    ndim = len(shape)
    dim = dim % ndim
    D = shape[dim]
    kept_shape = tuple(s for i, s in enumerate(shape) if i != dim)
    pre = 1
    for s in shape[:dim]:
        pre *= s
    post = 1
    for s in shape[dim + 1:]:
        post *= s
    itemsize = jnp.dtype(out_dtype).itemsize
    eps = float(eps)

    if post == 1:
        # Fast path: reduction dim is (effectively) last. Zero-copy reshape to
        # (R, D), reduce over the lane axis, (rows_tile, 1) output.
        R = pre
        x1r = x1.reshape(R, D)
        x2r = x2.reshape(R, D)
        rows_tile = _rows_tile if _rows_tile is not None else _pick_rows_tile(R, D, itemsize)
        n_rows = pl.cdiv(R, rows_tile)
        kernel = functools.partial(_cos_sim_lane_kernel, eps=eps)
        out = pl.pallas_call(
            kernel,
            out_shape=jax.ShapeDtypeStruct((R, 1), out_dtype),
            grid_spec=pltpu.PrefetchScalarGridSpec(
                num_scalar_prefetch=0,
                grid=(n_rows,),
                in_specs=[
                    pl.BlockSpec((rows_tile, D), lambda i: (i, 0)),
                    pl.BlockSpec((rows_tile, D), lambda i: (i, 0)),
                ],
                out_specs=pl.BlockSpec((rows_tile, 1), lambda i: (i, 0)),
            ),
            compiler_params=pltpu.CompilerParams(
                dimension_semantics=("parallel",),
                vmem_limit_bytes=_VMEM_LIMIT_BYTES),
        )(x1r, x2r)
        return out.reshape(kept_shape)

    # General case: zero-copy reshape to (pre, D, post); reduce D on sublanes.
    x1r = x1.reshape(pre, D, post)
    x2r = x2.reshape(pre, D, post)
    pre_tile, post_tile, d_tile = _pick_sublane_tiles(pre, D, post, itemsize)
    if _pre_tile is not None:
        pre_tile = _pre_tile
    if _post_tile is not None:
        post_tile = _post_tile
    if _d_tile is not None:
        d_tile = _d_tile
    n_pre = pl.cdiv(pre, pre_tile)
    n_post = pl.cdiv(post, post_tile)
    n_d = pl.cdiv(D, d_tile)
    mask_d = (n_d > 1) and (D % d_tile != 0)

    kernel = functools.partial(_cos_sim_sublane_kernel, eps=eps, d_total=D,
                               d_tile=d_tile, mask_d=mask_d)
    out = pl.pallas_call(
        kernel,
        out_shape=jax.ShapeDtypeStruct((pre, 1, post), out_dtype),
        grid_spec=pltpu.PrefetchScalarGridSpec(
            num_scalar_prefetch=0,
            grid=(n_pre, n_post, n_d),
            in_specs=[
                pl.BlockSpec((pre_tile, d_tile, post_tile),
                             lambda i, j, k: (i, k, j)),
                pl.BlockSpec((pre_tile, d_tile, post_tile),
                             lambda i, j, k: (i, k, j)),
            ],
            out_specs=pl.BlockSpec((pre_tile, 1, post_tile),
                                   lambda i, j, k: (i, 0, j)),
            scratch_shapes=[
                pltpu.VMEM((pre_tile, 1, post_tile), jnp.float32),
                pltpu.VMEM((pre_tile, 1, post_tile), jnp.float32),
                pltpu.VMEM((pre_tile, 1, post_tile), jnp.float32),
            ],
        ),
        compiler_params=pltpu.CompilerParams(
            dimension_semantics=("parallel", "parallel", "arbitrary"),
            vmem_limit_bytes=_VMEM_LIMIT_BYTES),
    )(x1r, x2r)
    return out.reshape(kept_shape)


# ----------------------------------------------------------------------------
# Self-test
# ----------------------------------------------------------------------------
if __name__ == "__main__":
    key = jax.random.PRNGKey(0)
    keys = jax.random.split(key, 12)

    def ref_cos(a, b, dim, eps=1e-8):
        a = a.astype(jnp.float32)
        b = b.astype(jnp.float32)
        dot = jnp.sum(a * b, axis=dim)
        n1 = jnp.sqrt(jnp.sum(a * a, axis=dim))
        n2 = jnp.sqrt(jnp.sum(b * b, axis=dim))
        return dot / jnp.maximum(n1 * n2, eps)

    def check(out, ref, tol, name):
        assert out.shape == ref.shape, (name, out.shape, ref.shape)
        err = float(jnp.max(jnp.abs(out.astype(jnp.float32) - ref)))
        assert err <= tol, (name, err)

    # 1) Module default: 3-D input, dim=1 (sublane-reduction path).
    x1 = jax.random.normal(keys[0], (2, 32, 16), jnp.float32)
    x2 = jax.random.normal(keys[1], (2, 32, 16), jnp.float32)
    out = jax.block_until_ready(cosine_similarity(x1, x2, dim=1))
    check(out, ref_cos(x1, x2, 1), 1e-5, "t1")

    # 2) dim == last (lane-reduction fast path).
    a = jax.random.normal(keys[2], (8, 32), jnp.float32)
    b = jax.random.normal(keys[3], (8, 32), jnp.float32)
    out = jax.block_until_ready(cosine_similarity(a, b, dim=-1))
    check(out, ref_cos(a, b, -1), 1e-5, "t2")

    # 3) Multiple lane (post) blocks with a ragged, Pallas-masked edge.
    c1 = jax.random.normal(keys[4], (2, 16, 300), jnp.float32)
    c2 = jax.random.normal(keys[5], (2, 16, 300), jnp.float32)
    out = jax.block_until_ready(cosine_similarity(c1, c2, dim=1, _post_tile=128))
    check(out, ref_cos(c1, c2, 1), 1e-5, "t3")

    # 4) Split + ragged reduction dim (accumulator path, in-kernel D mask).
    d1 = jax.random.normal(keys[6], (2, 100, 256), jnp.float32)
    d2 = jax.random.normal(keys[7], (2, 100, 256), jnp.float32)
    out = jax.block_until_ready(cosine_similarity(d1, d2, dim=1, _d_tile=32))
    check(out, ref_cos(d1, d2, 1), 1e-5, "t4")

    # 5) Ragged row tiling on the dim==last path.
    e1 = jax.random.normal(keys[8], (260, 64), jnp.float32)
    e2 = jax.random.normal(keys[9], (260, 64), jnp.float32)
    out = jax.block_until_ready(cosine_similarity(e1, e2, dim=1, _rows_tile=64))
    check(out, ref_cos(e1, e2, 1), 1e-5, "t5")

    # 6) bf16 inputs with a broadcast operand.
    f1 = jax.random.normal(keys[10], (2, 32, 16), jnp.float32).astype(jnp.bfloat16)
    f2 = jax.random.normal(keys[11], (1, 32, 16), jnp.float32).astype(jnp.bfloat16)
    out = jax.block_until_ready(cosine_similarity(f1, f2, dim=1))
    check(out, ref_cos(f1, jnp.broadcast_to(f2, f1.shape), 1), 2e-2, "t6")

    print("KERNEL_OK")
</pallas_src>

<mosaic_0001>
module attributes {stable_mosaic.version = 11 : i64} {
  func.func @_cos_sim_sublane_kernel(%arg0: i32, %arg1: i32, %arg2: i32, %arg3: memref<2x32x16xf32, #tpu.memory_space<vmem>>, %arg4: memref<2x32x16xf32, #tpu.memory_space<vmem>>, %arg5: memref<2x1x16xf32, #tpu.memory_space<vmem>>, %arg6: memref<2x1x16xf32, #tpu.memory_space<vmem>>, %arg7: memref<2x1x16xf32, #tpu.memory_space<vmem>>, %arg8: memref<2x1x16xf32, #tpu.memory_space<vmem>>) attributes {dimension_semantics = [#tpu.dimension_semantics<parallel>, #tpu.dimension_semantics<parallel>, #tpu.dimension_semantics<arbitrary>], iteration_bounds = array<i64: 1, 1, 1>, scalar_prefetch = 0 : i64, scratch_operands = 3 : i64, tpu.core_type = #tpu.core_type<tc>, window_params = [{transform_indices = @transform_0, window_bounds = array<i64: 2, 32, 16>}, {transform_indices = @transform_1, window_bounds = array<i64: 2, 32, 16>}, {transform_indices = @transform_2, window_bounds = array<i64: 2, 1, 16>}]} {
    %c0_i32 = arith.constant 0 : i32
    %0 = arith.cmpi eq, %arg2, %c0_i32 : i32
    %1 = arith.extui %0 : i1 to i32
    %c0_i32_0 = arith.constant 0 : i32
    %2 = arith.cmpi ne, %1, %c0_i32_0 : i32
    scf.if %2 {
      %cst_28 = arith.constant 0.000000e+00 : f32
      %26 = vector.broadcast %cst_28 : f32 to vector<2x1x16xf32>
      %c0_29 = arith.constant 0 : index
      %c0_30 = arith.constant 0 : index
      %c0_31 = arith.constant 0 : index
      %27 = vector.load %arg6[%c0_29, %c0_30, %c0_31] : memref<2x1x16xf32, #tpu.memory_space<vmem>>, vector<2x1x16xf32>
      tpu.vector_store %arg6[%c0_29, %c0_30, %c0_31], %26 {strides = array<i32>} : memref<2x1x16xf32, #tpu.memory_space<vmem>>, vector<2x1x16xf32>,
      %cst_32 = arith.constant 0.000000e+00 : f32
      %28 = vector.broadcast %cst_32 : f32 to vector<2x1x16xf32>
      %c0_33 = arith.constant 0 : index
      %c0_34 = arith.constant 0 : index
      %c0_35 = arith.constant 0 : index
      %29 = vector.load %arg7[%c0_33, %c0_34, %c0_35] : memref<2x1x16xf32, #tpu.memory_space<vmem>>, vector<2x1x16xf32>
      tpu.vector_store %arg7[%c0_33, %c0_34, %c0_35], %28 {strides = array<i32>} : memref<2x1x16xf32, #tpu.memory_space<vmem>>, vector<2x1x16xf32>,
      %cst_36 = arith.constant 0.000000e+00 : f32
      %30 = vector.broadcast %cst_36 : f32 to vector<2x1x16xf32>
      %c0_37 = arith.constant 0 : index
      %c0_38 = arith.constant 0 : index
      %c0_39 = arith.constant 0 : index
      %31 = vector.load %arg8[%c0_37, %c0_38, %c0_39] : memref<2x1x16xf32, #tpu.memory_space<vmem>>, vector<2x1x16xf32>
      tpu.vector_store %arg8[%c0_37, %c0_38, %c0_39], %30 {strides = array<i32>} : memref<2x1x16xf32, #tpu.memory_space<vmem>>, vector<2x1x16xf32>,
    } else {
    }
    %c0 = arith.constant 0 : index
    %c0_1 = arith.constant 0 : index
    %c0_2 = arith.constant 0 : index
    %3 = vector.load %arg3[%c0, %c0_1, %c0_2] : memref<2x32x16xf32, #tpu.memory_space<vmem>>, vector<2x32x16xf32>
    %c0_3 = arith.constant 0 : index
    %c0_4 = arith.constant 0 : index
    %c0_5 = arith.constant 0 : index
    %4 = vector.load %arg4[%c0_3, %c0_4, %c0_5] : memref<2x32x16xf32, #tpu.memory_space<vmem>>, vector<2x32x16xf32>
    %c0_6 = arith.constant 0 : index
    %c0_7 = arith.constant 0 : index
    %c0_8 = arith.constant 0 : index
    %5 = vector.load %arg6[%c0_6, %c0_7, %c0_8] : memref<2x1x16xf32, #tpu.memory_space<vmem>>, vector<2x1x16xf32>
    %6 = arith.mulf %3, %4 : vector<2x32x16xf32>
    %cst = arith.constant dense<0.000000e+00> : vector<2x16xf32>
    %7 = vector.multi_reduction <add>, %6, %cst [1] : vector<2x32x16xf32> to vector<2x16xf32>
    %8 = vector.shape_cast %7 : vector<2x16xf32> to vector<2x1x16xf32>
    %9 = arith.addf %5, %8 : vector<2x1x16xf32>
    %c0_9 = arith.constant 0 : index
    %c0_10 = arith.constant 0 : index
    %c0_11 = arith.constant 0 : index
    %10 = vector.load %arg6[%c0_9, %c0_10, %c0_11] : memref<2x1x16xf32, #tpu.memory_space<vmem>>, vector<2x1x16xf32>
    tpu.vector_store %arg6[%c0_9, %c0_10, %c0_11], %9 {strides = array<i32>} : memref<2x1x16xf32, #tpu.memory_space<vmem>>, vector<2x1x16xf32>,
    %c0_12 = arith.constant 0 : index
    %c0_13 = arith.constant 0 : index
    %c0_14 = arith.constant 0 : index
    %11 = vector.load %arg7[%c0_12, %c0_13, %c0_14] : memref<2x1x16xf32, #tpu.memory_space<vmem>>, vector<2x1x16xf32>
    %12 = arith.mulf %3, %3 : vector<2x32x16xf32>
    %cst_15 = arith.constant dense<0.000000e+00> : vector<2x16xf32>
    %13 = vector.multi_reduction <add>, %12, %cst_15 [1] : vector<2x32x16xf32> to vector<2x16xf32>
    %14 = vector.shape_cast %13 : vector<2x16xf32> to vector<2x1x16xf32>
    %15 = arith.addf %11, %14 : vector<2x1x16xf32>
    %c0_16 = arith.constant 0 : index
    %c0_17 = arith.constant 0 : index
    %c0_18 = arith.constant 0 : index
    %16 = vector.load %arg7[%c0_16, %c0_17, %c0_18] : memref<2x1x16xf32, #tpu.memory_space<vmem>>, vector<2x1x16xf32>
    tpu.vector_store %arg7[%c0_16, %c0_17, %c0_18], %15 {strides = array<i32>} : memref<2x1x16xf32, #tpu.memory_space<vmem>>, vector<2x1x16xf32>,
    %c0_19 = arith.constant 0 : index
    %c0_20 = arith.constant 0 : index
    %c0_21 = arith.constant 0 : index
    %17 = vector.load %arg8[%c0_19, %c0_20, %c0_21] : memref<2x1x16xf32, #tpu.memory_space<vmem>>, vector<2x1x16xf32>
    %18 = arith.mulf %4, %4 : vector<2x32x16xf32>
    %cst_22 = arith.constant dense<0.000000e+00> : vector<2x16xf32>
    %19 = vector.multi_reduction <add>, %18, %cst_22 [1] : vector<2x32x16xf32> to vector<2x16xf32>
    %20 = vector.shape_cast %19 : vector<2x16xf32> to vector<2x1x16xf32>
    %21 = arith.addf %17, %20 : vector<2x1x16xf32>
    %c0_23 = arith.constant 0 : index
    %c0_24 = arith.constant 0 : index
    %c0_25 = arith.constant 0 : index
    %22 = vector.load %arg8[%c0_23, %c0_24, %c0_25] : memref<2x1x16xf32, #tpu.memory_space<vmem>>, vector<2x1x16xf32>
    tpu.vector_store %arg8[%c0_23, %c0_24, %c0_25], %21 {strides = array<i32>} : memref<2x1x16xf32, #tpu.memory_space<vmem>>, vector<2x1x16xf32>,
    %c0_i32_26 = arith.constant 0 : i32
    %23 = arith.cmpi eq, %arg2, %c0_i32_26 : i32
    %24 = arith.extui %23 : i1 to i32
    %c0_i32_27 = arith.constant 0 : i32
    %25 = arith.cmpi ne, %24, %c0_i32_27 : i32
    scf.if %25 {
      %c0_28 = arith.constant 0 : index
      %c0_29 = arith.constant 0 : index
      %c0_30 = arith.constant 0 : index
      %26 = vector.load %arg7[%c0_28, %c0_29, %c0_30] : memref<2x1x16xf32, #tpu.memory_space<vmem>>, vector<2x1x16xf32>
      %c0_31 = arith.constant 0 : index
      %c0_32 = arith.constant 0 : index
      %c0_33 = arith.constant 0 : index
      %27 = vector.load %arg8[%c0_31, %c0_32, %c0_33] : memref<2x1x16xf32, #tpu.memory_space<vmem>>, vector<2x1x16xf32>
      %28 = arith.mulf %26, %27 : vector<2x1x16xf32>
      %cst_34 = arith.constant 1.000000e-16 : f32
      %29 = vector.broadcast %cst_34 : f32 to vector<2x1x16xf32>
      %30 = arith.maximumf %28, %29 : vector<2x1x16xf32>
      %c0_35 = arith.constant 0 : index
      %c0_36 = arith.constant 0 : index
      %c0_37 = arith.constant 0 : index
      %31 = vector.load %arg6[%c0_35, %c0_36, %c0_37] : memref<2x1x16xf32, #tpu.memory_space<vmem>>, vector<2x1x16xf32>
      %32 = math.rsqrt %30 : vector<2x1x16xf32>
      %33 = arith.mulf %31, %32 : vector<2x1x16xf32>
      %c0_38 = arith.constant 0 : index
      %c0_39 = arith.constant 0 : index
      %c0_40 = arith.constant 0 : index
      %34 = vector.load %arg5[%c0_38, %c0_39, %c0_40] : memref<2x1x16xf32, #tpu.memory_space<vmem>>, vector<2x1x16xf32>
      tpu.vector_store %arg5[%c0_38, %c0_39, %c0_40], %33 {strides = array<i32>} : memref<2x1x16xf32, #tpu.memory_space<vmem>>, vector<2x1x16xf32>,
    } else {
    }
    return
  }
  func.func @transform_0(%arg0: i32, %arg1: i32, %arg2: i32) -> (i32, i32, i32) {
    %c0_i32 = arith.constant 0 : i32
    return %arg0, %arg2, %arg1 : i32, i32, i32
  }
  func.func @transform_1(%arg0: i32, %arg1: i32, %arg2: i32) -> (i32, i32, i32) {
    %c0_i32 = arith.constant 0 : i32
    return %arg0, %arg2, %arg1 : i32, i32, i32
  }
  func.func @transform_2(%arg0: i32, %arg1: i32, %arg2: i32) -> (i32, i32, i32) {
    %c0_i32 = arith.constant 0 : i32
    %c0_i32_0 = arith.constant 0 : i32
    return %arg0, %c0_i32, %arg1 : i32, i32, i32
  }
}

</mosaic_0001>

<llo_original>
// kernel: tpu_custom_call.1
$region0: #{tpu_custom_call.1}
  #allocation0 [shape = 'u32[]', space=smem, size = 0x4, offset = 0x4, fixed_abs, tag = 'smem constant byte address 0x4 - core index']
  #allocation1 [shape = 'u32[144,128]{1,0:T(1,128)}', space=vmem, size = 0x12000, scoped, tag = 'internal scratch']
  #allocation2 [shape = 'f32[2,1,16]{2,1,0:T(1,128)}', space=vmem, size = 0x400, scoped, tag = 'scratch operand']
  #allocation3 [shape = 'f32[2,1,16]{2,1,0:T(1,128)}', space=vmem, size = 0x400, scoped, tag = 'scratch operand']
  #allocation4 [shape = 'f32[2,1,16]{2,1,0:T(1,128)}', space=vmem, size = 0x400, scoped, tag = 'scratch operand']
  %s0 = inlined_call_operand.vmem [shape: f32[2,32,16], index: 0, kind: input, shape index: {}]
  %s1 = inlined_call_operand.vmem [shape: f32[2,32,16], index: 1, kind: input, shape index: {}]
  %s2 = inlined_call_operand.hbm [shape: f32[2,1,16], index: 2, kind: output, shape index: {}]
  %s3 = sld [smem:[#allocation0]]
  $region26: #{tpu_custom_call.1} parent=0
    _
  %s5 = ssub.s32 1, %s3
  %s6 = scalar_select 0, %s5, %s3
  $region1: #{tpu_custom_call.1} parent=0
    #allocation5 [shape = 'u8[1024]{0}', space=vmem, size = 0x400, scoped, tag = 'output window, operand 0, single buffered']
    #allocation6 [shape = 's32[1]{0}', space=sflag, size = 0x4, scoped, tag = 'scoped memory for tpu_custom_call.1']
    %7 = vsyncpa [#allocation6], 0
    // Predicated region
    $region2: #{tpu_custom_call.1} parent=1 // pred_check
      _
    $region3: #{tpu_custom_call.1} parent=1 // pred_check_branch
      %9 = sbr.rel (0) target = $region5
    $region4: #{tpu_custom_call.1} parent=1 // pred_region
      _
    $region5: #{tpu_custom_call.1} parent=1 // pred_fallthru
      _
    // Predicated region
    $region6: #{tpu_custom_call.1} parent=1 // pred_check
      _
    $region7: #{tpu_custom_call.1} parent=1 // pred_check_branch
      %11 = sbr.rel (0) target = $region9
    $region8: #{tpu_custom_call.1} parent=1 // pred_region
      _
    $region9: #{tpu_custom_call.1} parent=1 // pred_fallthru
      _
    %p12 = scmp.eq.s32.totalorder 0, 0
    // Predicated region
    $region10: #{tpu_custom_call.1} parent=1 // pred_check
      %p13 = pneg %p12
    $region11: #{tpu_custom_call.1} parent=1 // pred_check_branch
      %15 = sbr.rel (%p13) target = $region13
    $region12: #{tpu_custom_call.1} parent=1 // pred_region
      %vm16 = vcmask 122880
      %17 = vst.msk [vmem:[#allocation2] sm:$0x1] %vm16, 0.0
      %18 = vst.msk [vmem:[#allocation2 + $0x1] sm:$0x1] %vm16, 0.0
      %19 = vst.msk [vmem:[#allocation3] sm:$0x1] %vm16, 0.0
      %20 = vst.msk [vmem:[#allocation3 + $0x1] sm:$0x1] %vm16, 0.0
      %21 = vst.msk [vmem:[#allocation4] sm:$0x1] %vm16, 0.0
      %22 = vst.msk [vmem:[#allocation4 + $0x1] sm:$0x1] %vm16, 0.0
    $region13: #{tpu_custom_call.1} parent=1 // pred_fallthru
      _
    %v23 = vld [vmem:[%s0] sm:$0xff]
    %v24 = vld [vmem:[%s0 + $0x8] sm:$0xff]
    %v25 = vld [vmem:[%s0 + $0x10] sm:$0xff]
    %v26 = vld [vmem:[%s0 + $0x18] sm:$0xff]
    %v27 = vld [vmem:[%s0 + $0x20] sm:$0xff]
    %v28 = vld [vmem:[%s0 + $0x28] sm:$0xff]
    %v29 = vld [vmem:[%s0 + $0x30] sm:$0xff]
    %v30 = vld [vmem:[%s0 + $0x38] sm:$0xff]
    %v31 = vld [vmem:[%s1] sm:$0xff]
    %v32 = vld [vmem:[%s1 + $0x8] sm:$0xff]
    %v33 = vld [vmem:[%s1 + $0x10] sm:$0xff]
    %v34 = vld [vmem:[%s1 + $0x18] sm:$0xff]
    %v35 = vld [vmem:[%s1 + $0x20] sm:$0xff]
    %v36 = vld [vmem:[%s1 + $0x28] sm:$0xff]
    %v37 = vld [vmem:[%s1 + $0x30] sm:$0xff]
    %v38 = vld [vmem:[%s1 + $0x38] sm:$0xff]
    %v39 = vld [vmem:[#allocation2] sm:$0x1]
    %v40 = vld [vmem:[#allocation2 + $0x1] sm:$0x1]
    %v41 = vmul.f32 %v23, %v31
    %v42 = vmul.f32 %v24, %v32
    %v43 = vmul.f32 %v25, %v33
    %v44 = vmul.f32 %v26, %v34
    %v45 = vmul.f32 %v27, %v35
    %v46 = vmul.f32 %v28, %v36
    %v47 = vmul.f32 %v29, %v37
    %v48 = vmul.f32 %v30, %v38
    %vm49 = vcmask 130048
    %v50 = vsel %vm49, %v41, 0.0
    %v51 = vsel %vm49, %v42, 0.0
    %v52 = vadd.f32 %v50, %v51
    %v53 = vsel %vm49, %v43, 0.0
    %v54 = vadd.f32 %v52, %v53
    %v55 = vsel %vm49, %v44, 0.0
    %v56 = vadd.f32 %v54, %v55
    %v57 = vrot.slane %v56, 4
    %v58 = vadd.f32 %v56, %v57
    %v59 = vrot.slane %v58, 2
    %v60 = vadd.f32 %v58, %v59
    %v61 = vrot.slane %v60, 1
    %v62 = vadd.f32 %v60, %v61
    %v63 = vsel %vm49, %v45, 0.0
    %v64 = vsel %vm49, %v46, 0.0
    %v65 = vadd.f32 %v63, %v64
    %v66 = vsel %vm49, %v47, 0.0
    %v67 = vadd.f32 %v65, %v66
    %v68 = vsel %vm49, %v48, 0.0
    %v69 = vadd.f32 %v67, %v68
    %v70 = vrot.slane %v69, 4
    %v71 = vadd.f32 %v69, %v70
    %v72 = vrot.slane %v71, 2
    %v73 = vadd.f32 %v71, %v72
    %v74 = vrot.slane %v73, 1
    %v75 = vadd.f32 %v73, %v74
    %v76 = vadd.f32 %v39, %v62
    %v77 = vadd.f32 %v40, %v75
    %vm78 = vcmask 122880
    %79 = vst.msk [vmem:[#allocation2] sm:$0x1] %vm78, %v76
    %80 = vst.msk [vmem:[#allocation2 + $0x1] sm:$0x1] %vm78, %v77
    %v81 = vld [vmem:[#allocation3] sm:$0x1]
    %v82 = vld [vmem:[#allocation3 + $0x1] sm:$0x1]
    %v83 = vmul.f32 %v23, %v23
    %v84 = vmul.f32 %v24, %v24
    %v85 = vmul.f32 %v25, %v25
    %v86 = vmul.f32 %v26, %v26
    %v87 = vmul.f32 %v27, %v27
    %v88 = vmul.f32 %v28, %v28
    %v89 = vmul.f32 %v29, %v29
    %v90 = vmul.f32 %v30, %v30
    %v91 = vsel %vm49, %v83, 0.0
    %v92 = vsel %vm49, %v84, 0.0
    %v93 = vadd.f32 %v91, %v92
    %v94 = vsel %vm49, %v85, 0.0
    %v95 = vadd.f32 %v93, %v94
    %v96 = vsel %vm49, %v86, 0.0
    %v97 = vadd.f32 %v95, %v96
    %v98 = vrot.slane %v97, 4
    %v99 = vadd.f32 %v97, %v98
    %v100 = vrot.slane %v99, 2
    %v101 = vadd.f32 %v99, %v100
    %v102 = vrot.slane %v101, 1
    %v103 = vadd.f32 %v101, %v102
    %v104 = vsel %vm49, %v87, 0.0
    %v105 = vsel %vm49, %v88, 0.0
    %v106 = vadd.f32 %v104, %v105
    %v107 = vsel %vm49, %v89, 0.0
    %v108 = vadd.f32 %v106, %v107
    %v109 = vsel %vm49, %v90, 0.0
    %v110 = vadd.f32 %v108, %v109
    %v111 = vrot.slane %v110, 4
    %v112 = vadd.f32 %v110, %v111
    %v113 = vrot.slane %v112, 2
    %v114 = vadd.f32 %v112, %v113
    %v115 = vrot.slane %v114, 1
    %v116 = vadd.f32 %v114, %v115
    %v117 = vadd.f32 %v81, %v103
    %v118 = vadd.f32 %v82, %v116
    %119 = vst.msk [vmem:[#allocation3] sm:$0x1] %vm78, %v117
    %120 = vst.msk [vmem:[#allocation3 + $0x1] sm:$0x1] %vm78, %v118
    %v121 = vld [vmem:[#allocation4] sm:$0x1]
    %v122 = vld [vmem:[#allocation4 + $0x1] sm:$0x1]
    %v123 = vmul.f32 %v31, %v31
    %v124 = vmul.f32 %v32, %v32
    %v125 = vmul.f32 %v33, %v33
    %v126 = vmul.f32 %v34, %v34
    %v127 = vmul.f32 %v35, %v35
    %v128 = vmul.f32 %v36, %v36
    %v129 = vmul.f32 %v37, %v37
    %v130 = vmul.f32 %v38, %v38
    %v131 = vsel %vm49, %v123, 0.0
    %v132 = vsel %vm49, %v124, 0.0
    %v133 = vadd.f32 %v131, %v132
    %v134 = vsel %vm49, %v125, 0.0
    %v135 = vadd.f32 %v133, %v134
    %v136 = vsel %vm49, %v126, 0.0
    %v137 = vadd.f32 %v135, %v136
    %v138 = vrot.slane %v137, 4
    %v139 = vadd.f32 %v137, %v138
    %v140 = vrot.slane %v139, 2
    %v141 = vadd.f32 %v139, %v140
    %v142 = vrot.slane %v141, 1
    %v143 = vadd.f32 %v141, %v142
    %v144 = vsel %vm49, %v127, 0.0
    %v145 = vsel %vm49, %v128, 0.0
    %v146 = vadd.f32 %v144, %v145
    %v147 = vsel %vm49, %v129, 0.0
    %v148 = vadd.f32 %v146, %v147
    %v149 = vsel %vm49, %v130, 0.0
    %v150 = vadd.f32 %v148, %v149
    %v151 = vrot.slane %v150, 4
    %v152 = vadd.f32 %v150, %v151
    %v153 = vrot.slane %v152, 2
    %v154 = vadd.f32 %v152, %v153
    %v155 = vrot.slane %v154, 1
    %v156 = vadd.f32 %v154, %v155
    %v157 = vadd.f32 %v121, %v143
    %v158 = vadd.f32 %v122, %v156
    %159 = vst.msk [vmem:[#allocation4] sm:$0x1] %vm78, %v157
    %160 = vst.msk [vmem:[#allocation4 + $0x1] sm:$0x1] %vm78, %v158
    // Predicated region
    $region14: #{tpu_custom_call.1} parent=1 // pred_check
      %p161 = pneg %p12
    $region15: #{tpu_custom_call.1} parent=1 // pred_check_branch
      %163 = sbr.rel (%p161) target = $region17
    $region16: #{tpu_custom_call.1} parent=1 // pred_region
      %v164 = vld [vmem:[#allocation3] sm:$0x1]
      %v165 = vld [vmem:[#allocation3 + $0x1] sm:$0x1]
      %v166 = vld [vmem:[#allocation4] sm:$0x1]
      %v167 = vld [vmem:[#allocation4 + $0x1] sm:$0x1]
      %v168 = vmul.f32 %v164, %v166
      %v169 = vmul.f32 %v165, %v167
      %v170 = vmax.f32 %v168, 1e-16
      %v171 = vmax.f32 %v169, 1e-16
      %v172 = vld [vmem:[#allocation2] sm:$0x1]
      %v173 = vld [vmem:[#allocation2 + $0x1] sm:$0x1]
      %v174 = vrsqrt.pop %v170
      %v175 = vrsqrt.pop %v171
      %v176 = vmul.f32 %v172, %v174
      %v177 = vmul.f32 %v173, %v175
      %178 = vst.msk [vmem:[#allocation5] sm:$0x1] %vm78, %v176
      %179 = vst.msk [vmem:[#allocation5 + $0x1] sm:$0x1] %vm78, %v177
    $region17: #{tpu_custom_call.1} parent=1 // pred_fallthru
      _
    // Predicated region
    $region18: #{tpu_custom_call.1} parent=1 // pred_check
      _
    $region19: #{tpu_custom_call.1} parent=1 // pred_check_branch
      %181 = sbr.rel (0) target = $region21
    $region20: #{tpu_custom_call.1} parent=1 // pred_region
      %s183 = ssub.s32 32, 32
      %184 = vsyncadd [#allocation6], %s183
      %s185 = sshll.u32 [#allocation5], 4
      %s186 = int_to_ptr.vmem [resolvable:$true] %s185
      %191 = dma.vmem_to_hbm [thread:$0]  %s186, 32, %s2, [#allocation6], 16, 16, 1
    $region21: #{tpu_custom_call.1} parent=1 // pred_fallthru
      _
    // Predicated region
    $region22: #{tpu_custom_call.1} parent=1 // pred_check
      _
    $region23: #{tpu_custom_call.1} parent=1 // pred_check_branch
      %193 = sbr.rel (0) target = $region25
    $region24: #{tpu_custom_call.1} parent=1 // pred_region
      %194 = dma.done [#allocation6], 32
    $region25: #{tpu_custom_call.1} parent=1 // pred_fallthru
      _
    %195 = vsyncpa [#allocation6], 1

</llo_original>
